<compile_context>
chip_gen: v7x
topology: tpu7x:2x2x1
jax: 0.10.0
libtpu: 0.0.40
codegen_flags: <defaults>
</compile_context>

<pallas_src>
import jax
import jax.numpy as jnp
from jax.experimental import pallas as pl
from jax.experimental.pallas import tpu as pltpu

_LANES = 128


def mlp_kernel(x_ref, w1_ref, b1_ref, w2_ref, b2_ref, o_ref):
    """One batch tile.

    x_ref : (2, Rt, 128) VMEM  -- batch folded into (sublane rows, 128 lanes)
    w1_ref: (H, 2)  SMEM       -- PyTorch layout (out_features, in_features)
    b1_ref: (H,)    SMEM
    w2_ref: (H,)    SMEM       -- W2 row (1, H) flattened
    b2_ref: (1,)    SMEM
    o_ref : (Rt, 128) VMEM     -- lane- and sublane-dense output tile
    """
    x0 = x_ref[0]                      # (Rt, 128): feature 0 of every batch slot
    x1 = x_ref[1]                      # (Rt, 128): feature 1
    H = w1_ref.shape[0]

    acc = jnp.zeros_like(x0)
    # K=2 / K=10 -> pure VPU broadcast-MACs; weights are SMEM scalars (vsplat).
    # The layer-2 reduction is the unrolled "acc +=" chain: plain VALU adds on
    # dense vregs, no XLU cross-sublane reduce, no sublane padding.
    for k in range(H):
        h_k = w1_ref[k, 0] * x0 + w1_ref[k, 1] * x1 + b1_ref[k]
        acc = acc + w2_ref[k] * jnp.maximum(h_k, 0.0)   # ReLU on the VPU
    o_ref[...] = (acc + b2_ref[0]).astype(o_ref.dtype)


def mlp_forward(x, w1, b1, w2, b2, *, features_first=False, batch_tile=128 * 1024):
    """Forward pass of the 2 -> 10 -> 1 MLP.

    x: (B, 2), or (2, B) when features_first=True (preferred for large B:
       avoids a wrapper-side HBM transpose round trip of the whole input).
    w1: (10, 2); b1: (10,); w2: (1, 10); b2: (1,)  -- PyTorch nn.Linear layouts.
    Returns (B, 1) float32.
    """
    if features_first:
        x_t = x.astype(jnp.float32)                       # (2, B) zero-copy path
    else:
        # NOTE: for large B prefer features_first=True; this transpose is an
        # extra HBM read+write of the input.  Negligible for the tiny spec case.
        x_t = x.astype(jnp.float32).T                     # (2, B)
    B = x_t.shape[1]
    H = w1.shape[0]

    assert batch_tile % _LANES == 0, "batch_tile must be a multiple of 128 lanes"
    row_tile_full = batch_tile // _LANES                  # rows of 128 lanes / step
    R = pl.cdiv(B, _LANES)                                # rows needed to hold B
    if R <= row_tile_full:
        row_tile, nb = R, 1                               # single full-extent block
    else:
        row_tile, nb = row_tile_full, pl.cdiv(R, row_tile_full)
    R_pad = nb * row_tile
    B_pad = R_pad * _LANES

    if B_pad != B:
        x_t = jnp.pad(x_t, ((0, 0), (0, B_pad - B)))      # zero-pad ragged batch
    x_f = x_t.reshape(2, R_pad, _LANES)                   # free row-major reshape

    w1_f = w1.astype(jnp.float32)                         # (H, 2) -> SMEM
    b1_f = b1.reshape(H).astype(jnp.float32)
    w2_f = w2.reshape(H).astype(jnp.float32)
    b2_f = b2.reshape(1).astype(jnp.float32)

    smem = pltpu.MemorySpace.SMEM
    out = pl.pallas_call(
        mlp_kernel,
        out_shape=jax.ShapeDtypeStruct((R_pad, _LANES), jnp.float32),
        grid=(nb,),
        in_specs=[
            pl.BlockSpec((2, row_tile, _LANES), lambda i: (0, i, 0)),  # x tile
            pl.BlockSpec(memory_space=smem),                           # w1
            pl.BlockSpec(memory_space=smem),                           # b1
            pl.BlockSpec(memory_space=smem),                           # w2
            pl.BlockSpec(memory_space=smem),                           # b2
        ],
        out_specs=pl.BlockSpec((row_tile, _LANES), lambda i: (i, 0)),
        compiler_params=pltpu.CompilerParams(
            dimension_semantics=("parallel",)),            # megacore / v7x 2-TC split
    )(x_f, w1_f, b1_f, w2_f, b2_f)

    # (R_pad,128) row-major == batch order -> free reshape, slice off padding.
    return out.reshape(B_pad)[:B].reshape(B, 1)


def init_params(key):
    # Mimic nn.Linear's U(-1/sqrt(fan_in), 1/sqrt(fan_in)); PyTorch layouts.
    k1, k2, k3, k4 = jax.random.split(key, 4)
    bound1 = 1.0 / jnp.sqrt(2.0)
    bound2 = 1.0 / jnp.sqrt(10.0)
    w1 = jax.random.uniform(k1, (10, 2), jnp.float32, -bound1, bound1)
    b1 = jax.random.uniform(k2, (10,), jnp.float32, -bound1, bound1)
    w2 = jax.random.uniform(k3, (1, 10), jnp.float32, -bound2, bound2)
    b2 = jax.random.uniform(k4, (1,), jnp.float32, -bound2, bound2)
    return w1, b1, w2, b2


def reference_forward(x, w1, b1, w2, b2):
    h = jnp.maximum(x @ w1.T + b1, 0.0)
    return h @ w2.T + b2


if __name__ == "__main__":
    key = jax.random.PRNGKey(0)
    kp, kx = jax.random.split(key)
    w1, b1, w2, b2 = init_params(kp)

    # --- spec case: the 12 (a, b) pairs from the original training script ----
    x_small = jnp.array(
        [[1, 2], [3, 4], [5, 6], [6, 7], [8, 9], [10, 11],
         [10, 12], [11, 13], [12, 13], [14, 15], [16, 17], [18, 19]],
        dtype=jnp.float32)
    out_small = jax.block_until_ready(mlp_forward(x_small, w1, b1, w2, b2))
    ref_small = reference_forward(x_small, w1, b1, w2, b2)
    assert out_small.shape == (12, 1), out_small.shape
    assert jnp.allclose(out_small, ref_small, atol=1e-4, rtol=1e-4)

    # --- grid-path / ragged-batch check (kept small & fast) ------------------
    # batch_tile is shrunk here ONLY so the multi-step grid + padding logic is
    # exercised at test size; the production default stays at 131072 lanes.
    # x is supplied features-first (2, B) to use the zero-copy input path.
    B = 3000
    x_big_t = jax.random.uniform(kx, (2, B), jnp.float32, 0.0, 20.0)
    out_big = jax.block_until_ready(
        mlp_forward(x_big_t, w1, b1, w2, b2, features_first=True, batch_tile=1024))
    ref_big = reference_forward(x_big_t.T, w1, b1, w2, b2)
    assert out_big.shape == (B, 1), out_big.shape
    assert jnp.allclose(out_big, ref_big, atol=1e-4, rtol=1e-4)

    print("KERNEL_OK")
</pallas_src>

<mosaic_0001>
module attributes {stable_mosaic.version = 11 : i64} {
  func.func @mlp_kernel(%arg0: i32, %arg1: memref<2x1x128xf32, #tpu.memory_space<vmem>>, %arg2: memref<10x2xf32, #tpu.memory_space<smem>>, %arg3: memref<10xf32, #tpu.memory_space<smem>>, %arg4: memref<10xf32, #tpu.memory_space<smem>>, %arg5: memref<1xf32, #tpu.memory_space<smem>>, %arg6: memref<1x128xf32, #tpu.memory_space<vmem>>) attributes {dimension_semantics = [#tpu.dimension_semantics<parallel>], iteration_bounds = array<i64: 1>, scalar_prefetch = 0 : i64, scratch_operands = 0 : i64, tpu.core_type = #tpu.core_type<tc>, window_params = [{transform_indices = @transform_0, window_bounds = array<i64: 2, 1, 128>}, {transform_indices = @transform_1, window_bounds = array<i64: 10, 2>}, {transform_indices = @transform_2, window_bounds = array<i64: 10>}, {transform_indices = @transform_3, window_bounds = array<i64: 10>}, {transform_indices = @transform_4, window_bounds = array<i64: 1>}, {transform_indices = @transform_5, window_bounds = array<i64: 1, 128>}]} {
    %c0 = arith.constant 0 : index
    %c0_0 = arith.constant 0 : index
    %c0_1 = arith.constant 0 : index
    %0 = vector.load %arg1[%c0, %c0_0, %c0_1] : memref<2x1x128xf32, #tpu.memory_space<vmem>>, vector<1x1x128xf32>
    %1 = vector.shape_cast %0 : vector<1x1x128xf32> to vector<1x128xf32>
    %c1 = arith.constant 1 : index
    %c0_2 = arith.constant 0 : index
    %c0_3 = arith.constant 0 : index
    %2 = vector.load %arg1[%c1, %c0_2, %c0_3] : memref<2x1x128xf32, #tpu.memory_space<vmem>>, vector<1x1x128xf32>
    %3 = vector.shape_cast %2 : vector<1x1x128xf32> to vector<1x128xf32>
    %cst = arith.constant 0.000000e+00 : f32
    %4 = vector.broadcast %cst : f32 to vector<1x128xf32>
    %c0_4 = arith.constant 0 : index
    %c0_5 = arith.constant 0 : index
    %5 = memref.load %arg2[%c0_4, %c0_5] : memref<10x2xf32, #tpu.memory_space<smem>>
    %6 = vector.broadcast %5 : f32 to vector<1x128xf32>
    %7 = arith.mulf %6, %1 : vector<1x128xf32>
    %c0_6 = arith.constant 0 : index
    %c1_7 = arith.constant 1 : index
    %8 = memref.load %arg2[%c0_6, %c1_7] : memref<10x2xf32, #tpu.memory_space<smem>>
    %9 = vector.broadcast %8 : f32 to vector<1x128xf32>
    %10 = arith.mulf %9, %3 : vector<1x128xf32>
    %11 = arith.addf %7, %10 : vector<1x128xf32>
    %c0_8 = arith.constant 0 : index
    %12 = memref.load %arg3[%c0_8] : memref<10xf32, #tpu.memory_space<smem>>
    %13 = vector.broadcast %12 : f32 to vector<1x128xf32>
    %14 = arith.addf %11, %13 : vector<1x128xf32>
    %c0_9 = arith.constant 0 : index
    %15 = memref.load %arg4[%c0_9] : memref<10xf32, #tpu.memory_space<smem>>
    %cst_10 = arith.constant 0.000000e+00 : f32
    %16 = vector.broadcast %cst_10 : f32 to vector<1x128xf32>
    %17 = arith.maximumf %14, %16 : vector<1x128xf32>
    %18 = vector.broadcast %15 : f32 to vector<1x128xf32>
    %19 = arith.mulf %18, %17 : vector<1x128xf32>
    %20 = arith.addf %4, %19 : vector<1x128xf32>
    %c1_11 = arith.constant 1 : index
    %c0_12 = arith.constant 0 : index
    %21 = memref.load %arg2[%c1_11, %c0_12] : memref<10x2xf32, #tpu.memory_space<smem>>
    %22 = vector.broadcast %21 : f32 to vector<1x128xf32>
    %23 = arith.mulf %22, %1 : vector<1x128xf32>
    %c1_13 = arith.constant 1 : index
    %c1_14 = arith.constant 1 : index
    %24 = memref.load %arg2[%c1_13, %c1_14] : memref<10x2xf32, #tpu.memory_space<smem>>
    %25 = vector.broadcast %24 : f32 to vector<1x128xf32>
    %26 = arith.mulf %25, %3 : vector<1x128xf32>
    %27 = arith.addf %23, %26 : vector<1x128xf32>
    %c1_15 = arith.constant 1 : index
    %28 = memref.load %arg3[%c1_15] : memref<10xf32, #tpu.memory_space<smem>>
    %29 = vector.broadcast %28 : f32 to vector<1x128xf32>
    %30 = arith.addf %27, %29 : vector<1x128xf32>
    %c1_16 = arith.constant 1 : index
    %31 = memref.load %arg4[%c1_16] : memref<10xf32, #tpu.memory_space<smem>>
    %cst_17 = arith.constant 0.000000e+00 : f32
    %32 = vector.broadcast %cst_17 : f32 to vector<1x128xf32>
    %33 = arith.maximumf %30, %32 : vector<1x128xf32>
    %34 = vector.broadcast %31 : f32 to vector<1x128xf32>
    %35 = arith.mulf %34, %33 : vector<1x128xf32>
    %36 = arith.addf %20, %35 : vector<1x128xf32>
    %c2 = arith.constant 2 : index
    %c0_18 = arith.constant 0 : index
    %37 = memref.load %arg2[%c2, %c0_18] : memref<10x2xf32, #tpu.memory_space<smem>>
    %38 = vector.broadcast %37 : f32 to vector<1x128xf32>
    %39 = arith.mulf %38, %1 : vector<1x128xf32>
    %c2_19 = arith.constant 2 : index
    %c1_20 = arith.constant 1 : index
    %40 = memref.load %arg2[%c2_19, %c1_20] : memref<10x2xf32, #tpu.memory_space<smem>>
    %41 = vector.broadcast %40 : f32 to vector<1x128xf32>
    %42 = arith.mulf %41, %3 : vector<1x128xf32>
    %43 = arith.addf %39, %42 : vector<1x128xf32>
    %c2_21 = arith.constant 2 : index
    %44 = memref.load %arg3[%c2_21] : memref<10xf32, #tpu.memory_space<smem>>
    %45 = vector.broadcast %44 : f32 to vector<1x128xf32>
    %46 = arith.addf %43, %45 : vector<1x128xf32>
    %c2_22 = arith.constant 2 : index
    %47 = memref.load %arg4[%c2_22] : memref<10xf32, #tpu.memory_space<smem>>
    %cst_23 = arith.constant 0.000000e+00 : f32
    %48 = vector.broadcast %cst_23 : f32 to vector<1x128xf32>
    %49 = arith.maximumf %46, %48 : vector<1x128xf32>
    %50 = vector.broadcast %47 : f32 to vector<1x128xf32>
    %51 = arith.mulf %50, %49 : vector<1x128xf32>
    %52 = arith.addf %36, %51 : vector<1x128xf32>
    %c3 = arith.constant 3 : index
    %c0_24 = arith.constant 0 : index
    %53 = memref.load %arg2[%c3, %c0_24] : memref<10x2xf32, #tpu.memory_space<smem>>
    %54 = vector.broadcast %53 : f32 to vector<1x128xf32>
    %55 = arith.mulf %54, %1 : vector<1x128xf32>
    %c3_25 = arith.constant 3 : index
    %c1_26 = arith.constant 1 : index
    %56 = memref.load %arg2[%c3_25, %c1_26] : memref<10x2xf32, #tpu.memory_space<smem>>
    %57 = vector.broadcast %56 : f32 to vector<1x128xf32>
    %58 = arith.mulf %57, %3 : vector<1x128xf32>
    %59 = arith.addf %55, %58 : vector<1x128xf32>
    %c3_27 = arith.constant 3 : index
    %60 = memref.load %arg3[%c3_27] : memref<10xf32, #tpu.memory_space<smem>>
    %61 = vector.broadcast %60 : f32 to vector<1x128xf32>
    %62 = arith.addf %59, %61 : vector<1x128xf32>
    %c3_28 = arith.constant 3 : index
    %63 = memref.load %arg4[%c3_28] : memref<10xf32, #tpu.memory_space<smem>>
    %cst_29 = arith.constant 0.000000e+00 : f32
    %64 = vector.broadcast %cst_29 : f32 to vector<1x128xf32>
    %65 = arith.maximumf %62, %64 : vector<1x128xf32>
    %66 = vector.broadcast %63 : f32 to vector<1x128xf32>
    %67 = arith.mulf %66, %65 : vector<1x128xf32>
    %68 = arith.addf %52, %67 : vector<1x128xf32>
    %c4 = arith.constant 4 : index
    %c0_30 = arith.constant 0 : index
    %69 = memref.load %arg2[%c4, %c0_30] : memref<10x2xf32, #tpu.memory_space<smem>>
    %70 = vector.broadcast %69 : f32 to vector<1x128xf32>
    %71 = arith.mulf %70, %1 : vector<1x128xf32>
    %c4_31 = arith.constant 4 : index
    %c1_32 = arith.constant 1 : index
    %72 = memref.load %arg2[%c4_31, %c1_32] : memref<10x2xf32, #tpu.memory_space<smem>>
    %73 = vector.broadcast %72 : f32 to vector<1x128xf32>
    %74 = arith.mulf %73, %3 : vector<1x128xf32>
    %75 = arith.addf %71, %74 : vector<1x128xf32>
    %c4_33 = arith.constant 4 : index
    %76 = memref.load %arg3[%c4_33] : memref<10xf32, #tpu.memory_space<smem>>
    %77 = vector.broadcast %76 : f32 to vector<1x128xf32>
    %78 = arith.addf %75, %77 : vector<1x128xf32>
    %c4_34 = arith.constant 4 : index
    %79 = memref.load %arg4[%c4_34] : memref<10xf32, #tpu.memory_space<smem>>
    %cst_35 = arith.constant 0.000000e+00 : f32
    %80 = vector.broadcast %cst_35 : f32 to vector<1x128xf32>
    %81 = arith.maximumf %78, %80 : vector<1x128xf32>
    %82 = vector.broadcast %79 : f32 to vector<1x128xf32>
    %83 = arith.mulf %82, %81 : vector<1x128xf32>
    %84 = arith.addf %68, %83 : vector<1x128xf32>
    %c5 = arith.constant 5 : index
    %c0_36 = arith.constant 0 : index
    %85 = memref.load %arg2[%c5, %c0_36] : memref<10x2xf32, #tpu.memory_space<smem>>
    %86 = vector.broadcast %85 : f32 to vector<1x128xf32>
    %87 = arith.mulf %86, %1 : vector<1x128xf32>
    %c5_37 = arith.constant 5 : index
    %c1_38 = arith.constant 1 : index
    %88 = memref.load %arg2[%c5_37, %c1_38] : memref<10x2xf32, #tpu.memory_space<smem>>
    %89 = vector.broadcast %88 : f32 to vector<1x128xf32>
    %90 = arith.mulf %89, %3 : vector<1x128xf32>
    %91 = arith.addf %87, %90 : vector<1x128xf32>
    %c5_39 = arith.constant 5 : index
    %92 = memref.load %arg3[%c5_39] : memref<10xf32, #tpu.memory_space<smem>>
    %93 = vector.broadcast %92 : f32 to vector<1x128xf32>
    %94 = arith.addf %91, %93 : vector<1x128xf32>
    %c5_40 = arith.constant 5 : index
    %95 = memref.load %arg4[%c5_40] : memref<10xf32, #tpu.memory_space<smem>>
    %cst_41 = arith.constant 0.000000e+00 : f32
    %96 = vector.broadcast %cst_41 : f32 to vector<1x128xf32>
    %97 = arith.maximumf %94, %96 : vector<1x128xf32>
    %98 = vector.broadcast %95 : f32 to vector<1x128xf32>
    %99 = arith.mulf %98, %97 : vector<1x128xf32>
    %100 = arith.addf %84, %99 : vector<1x128xf32>
    %c6 = arith.constant 6 : index
    %c0_42 = arith.constant 0 : index
    %101 = memref.load %arg2[%c6, %c0_42] : memref<10x2xf32, #tpu.memory_space<smem>>
    %102 = vector.broadcast %101 : f32 to vector<1x128xf32>
    %103 = arith.mulf %102, %1 : vector<1x128xf32>
    %c6_43 = arith.constant 6 : index
    %c1_44 = arith.constant 1 : index
    %104 = memref.load %arg2[%c6_43, %c1_44] : memref<10x2xf32, #tpu.memory_space<smem>>
    %105 = vector.broadcast %104 : f32 to vector<1x128xf32>
    %106 = arith.mulf %105, %3 : vector<1x128xf32>
    %107 = arith.addf %103, %106 : vector<1x128xf32>
    %c6_45 = arith.constant 6 : index
    %108 = memref.load %arg3[%c6_45] : memref<10xf32, #tpu.memory_space<smem>>
    %109 = vector.broadcast %108 : f32 to vector<1x128xf32>
    %110 = arith.addf %107, %109 : vector<1x128xf32>
    %c6_46 = arith.constant 6 : index
    %111 = memref.load %arg4[%c6_46] : memref<10xf32, #tpu.memory_space<smem>>
    %cst_47 = arith.constant 0.000000e+00 : f32
    %112 = vector.broadcast %cst_47 : f32 to vector<1x128xf32>
    %113 = arith.maximumf %110, %112 : vector<1x128xf32>
    %114 = vector.broadcast %111 : f32 to vector<1x128xf32>
    %115 = arith.mulf %114, %113 : vector<1x128xf32>
    %116 = arith.addf %100, %115 : vector<1x128xf32>
    %c7 = arith.constant 7 : index
    %c0_48 = arith.constant 0 : index
    %117 = memref.load %arg2[%c7, %c0_48] : memref<10x2xf32, #tpu.memory_space<smem>>
    %118 = vector.broadcast %117 : f32 to vector<1x128xf32>
    %119 = arith.mulf %118, %1 : vector<1x128xf32>
    %c7_49 = arith.constant 7 : index
    %c1_50 = arith.constant 1 : index
    %120 = memref.load %arg2[%c7_49, %c1_50] : memref<10x2xf32, #tpu.memory_space<smem>>
    %121 = vector.broadcast %120 : f32 to vector<1x128xf32>
    %122 = arith.mulf %121, %3 : vector<1x128xf32>
    %123 = arith.addf %119, %122 : vector<1x128xf32>
    %c7_51 = arith.constant 7 : index
    %124 = memref.load %arg3[%c7_51] : memref<10xf32, #tpu.memory_space<smem>>
    %125 = vector.broadcast %124 : f32 to vector<1x128xf32>
    %126 = arith.addf %123, %125 : vector<1x128xf32>
    %c7_52 = arith.constant 7 : index
    %127 = memref.load %arg4[%c7_52] : memref<10xf32, #tpu.memory_space<smem>>
    %cst_53 = arith.constant 0.000000e+00 : f32
    %128 = vector.broadcast %cst_53 : f32 to vector<1x128xf32>
    %129 = arith.maximumf %126, %128 : vector<1x128xf32>
    %130 = vector.broadcast %127 : f32 to vector<1x128xf32>
    %131 = arith.mulf %130, %129 : vector<1x128xf32>
    %132 = arith.addf %116, %131 : vector<1x128xf32>
    %c8 = arith.constant 8 : index
    %c0_54 = arith.constant 0 : index
    %133 = memref.load %arg2[%c8, %c0_54] : memref<10x2xf32, #tpu.memory_space<smem>>
    %134 = vector.broadcast %133 : f32 to vector<1x128xf32>
    %135 = arith.mulf %134, %1 : vector<1x128xf32>
    %c8_55 = arith.constant 8 : index
    %c1_56 = arith.constant 1 : index
    %136 = memref.load %arg2[%c8_55, %c1_56] : memref<10x2xf32, #tpu.memory_space<smem>>
    %137 = vector.broadcast %136 : f32 to vector<1x128xf32>
    %138 = arith.mulf %137, %3 : vector<1x128xf32>
    %139 = arith.addf %135, %138 : vector<1x128xf32>
    %c8_57 = arith.constant 8 : index
    %140 = memref.load %arg3[%c8_57] : memref<10xf32, #tpu.memory_space<smem>>
    %141 = vector.broadcast %140 : f32 to vector<1x128xf32>
    %142 = arith.addf %139, %141 : vector<1x128xf32>
    %c8_58 = arith.constant 8 : index
    %143 = memref.load %arg4[%c8_58] : memref<10xf32, #tpu.memory_space<smem>>
    %cst_59 = arith.constant 0.000000e+00 : f32
    %144 = vector.broadcast %cst_59 : f32 to vector<1x128xf32>
    %145 = arith.maximumf %142, %144 : vector<1x128xf32>
    %146 = vector.broadcast %143 : f32 to vector<1x128xf32>
    %147 = arith.mulf %146, %145 : vector<1x128xf32>
    %148 = arith.addf %132, %147 : vector<1x128xf32>
    %c9 = arith.constant 9 : index
    %c0_60 = arith.constant 0 : index
    %149 = memref.load %arg2[%c9, %c0_60] : memref<10x2xf32, #tpu.memory_space<smem>>
    %150 = vector.broadcast %149 : f32 to vector<1x128xf32>
    %151 = arith.mulf %150, %1 : vector<1x128xf32>
    %c9_61 = arith.constant 9 : index
    %c1_62 = arith.constant 1 : index
    %152 = memref.load %arg2[%c9_61, %c1_62] : memref<10x2xf32, #tpu.memory_space<smem>>
    %153 = vector.broadcast %152 : f32 to vector<1x128xf32>
    %154 = arith.mulf %153, %3 : vector<1x128xf32>
    %155 = arith.addf %151, %154 : vector<1x128xf32>
    %c9_63 = arith.constant 9 : index
    %156 = memref.load %arg3[%c9_63] : memref<10xf32, #tpu.memory_space<smem>>
    %157 = vector.broadcast %156 : f32 to vector<1x128xf32>
    %158 = arith.addf %155, %157 : vector<1x128xf32>
    %c9_64 = arith.constant 9 : index
    %159 = memref.load %arg4[%c9_64] : memref<10xf32, #tpu.memory_space<smem>>
    %cst_65 = arith.constant 0.000000e+00 : f32
    %160 = vector.broadcast %cst_65 : f32 to vector<1x128xf32>
    %161 = arith.maximumf %158, %160 : vector<1x128xf32>
    %162 = vector.broadcast %159 : f32 to vector<1x128xf32>
    %163 = arith.mulf %162, %161 : vector<1x128xf32>
    %164 = arith.addf %148, %163 : vector<1x128xf32>
    %c0_66 = arith.constant 0 : index
    %165 = memref.load %arg5[%c0_66] : memref<1xf32, #tpu.memory_space<smem>>
    %166 = vector.broadcast %165 : f32 to vector<1x128xf32>
    %167 = arith.addf %164, %166 : vector<1x128xf32>
    %c0_67 = arith.constant 0 : index
    %c0_68 = arith.constant 0 : index
    %168 = vector.load %arg6[%c0_67, %c0_68] : memref<1x128xf32, #tpu.memory_space<vmem>>, vector<1x128xf32>
    tpu.vector_store %arg6[%c0_67, %c0_68], %167 {strides = array<i32>} : memref<1x128xf32, #tpu.memory_space<vmem>>, vector<1x128xf32>,
    return
  }
  func.func @transform_0(%arg0: i32) -> (i32, i32, i32) {
    %c0_i32 = arith.constant 0 : i32
    %c0_i32_0 = arith.constant 0 : i32
    %c0_i32_1 = arith.constant 0 : i32
    return %c0_i32, %arg0, %c0_i32_0 : i32, i32, i32
  }
  func.func @transform_1(%arg0: i32) -> (i32, i32) {
    %c0_i32 = arith.constant 0 : i32
    %c0_i32_0 = arith.constant 0 : i32
    %c0_i32_1 = arith.constant 0 : i32
    return %c0_i32, %c0_i32_0 : i32, i32
  }
  func.func @transform_2(%arg0: i32) -> i32 {
    %c0_i32 = arith.constant 0 : i32
    %c0_i32_0 = arith.constant 0 : i32
    return %c0_i32 : i32
  }
  func.func @transform_3(%arg0: i32) -> i32 {
    %c0_i32 = arith.constant 0 : i32
    %c0_i32_0 = arith.constant 0 : i32
    return %c0_i32 : i32
  }
  func.func @transform_4(%arg0: i32) -> i32 {
    %c0_i32 = arith.constant 0 : i32
    %c0_i32_0 = arith.constant 0 : i32
    return %c0_i32 : i32
  }
  func.func @transform_5(%arg0: i32) -> (i32, i32) {
    %c0_i32 = arith.constant 0 : i32
    %c0_i32_0 = arith.constant 0 : i32
    return %arg0, %c0_i32 : i32, i32
  }
}

</mosaic_0001>

<llo_original>
// kernel: tpu_custom_call.1
$region0: #{tpu_custom_call.1}
  #allocation0 [shape = 'u32[]', space=smem, size = 0x4, offset = 0x4, fixed_abs, tag = 'smem constant byte address 0x4 - core index']
  #allocation1 [shape = 'u32[144,128]{1,0:T(1,128)}', space=vmem, size = 0x12000, scoped, tag = 'internal scratch']
  #allocation2 [shape = 'f32[1]{0:T(128)S(6)}', space=smem, size = 0x200, scoped, tag = 'scoped memory for tpu_custom_call.1']
  %s0 = inlined_call_operand.vmem [shape: f32[2,1,128], index: 0, kind: input, shape index: {}]
  %s1 = inlined_call_operand.vmem [shape: f32[10,2], index: 1, kind: input, shape index: {}]
  %s2 = inlined_call_operand.vmem [shape: f32[10], index: 2, kind: input, shape index: {}]
  %s3 = inlined_call_operand.vmem [shape: f32[10], index: 3, kind: input, shape index: {}]
  %s4 = inlined_call_operand.<no memory space> [shape: f32[1], index: 4, kind: input, shape index: {}]
  %s5 = inlined_call_operand.hbm [shape: f32[1,128], index: 5, kind: output, shape index: {}]
  %s6 = sld [smem:[#allocation0]]
  $region42: #{tpu_custom_call.1} parent=0
    _
  %s8 = ssub.s32 1, %s6
  %s9 = scalar_select 0, %s8, %s6
  %10 = sst [smem:[#allocation2]] %s4
  $region1: #{tpu_custom_call.1} parent=0
    #allocation3 [shape = 'u8[8192]{0}', space=smem, size = 0x2000, scoped, tag = 'input window, operand 1, single buffered']
    #allocation4 [shape = 's32[1]{0}', space=sflag, size = 0x4, scoped, tag = 'scoped memory for tpu_custom_call.1']
    #allocation5 [shape = 's32[1]{0}', space=sflag, size = 0x4, scoped, tag = 'scoped memory for tpu_custom_call.1']
    #allocation6 [shape = 'u8[512]{0}', space=smem, size = 0x200, scoped, tag = 'input window, operand 2, single buffered']
    #allocation7 [shape = 's32[1]{0}', space=sflag, size = 0x4, scoped, tag = 'scoped memory for tpu_custom_call.1']
    #allocation8 [shape = 'u8[512]{0}', space=smem, size = 0x200, scoped, tag = 'input window, operand 3, single buffered']
    #allocation9 [shape = 'u8[512]{0}', space=vmem, size = 0x400, scoped, tag = 'output window, operand 0, single buffered']
    %11 = vsyncpa [#allocation5], 0
    %12 = vsyncpa [#allocation7], 0
    %13 = vsyncpa [#allocation4], 0
    // Predicated region
    $region2: #{tpu_custom_call.1} parent=1 // pred_check
      _
    $region3: #{tpu_custom_call.1} parent=1 // pred_check_branch
      %15 = sbr.rel (0) target = $region5
    $region4: #{tpu_custom_call.1} parent=1 // pred_region
      _
    $region5: #{tpu_custom_call.1} parent=1 // pred_fallthru
      _
    // Predicated region
    $region6: #{tpu_custom_call.1} parent=1 // pred_check
      _
    $region7: #{tpu_custom_call.1} parent=1 // pred_check_branch
      %17 = sbr.rel (0) target = $region9
    $region8: #{tpu_custom_call.1} parent=1 // pred_region
      %s19 = ssub.s32 256, 256
      %20 = vsyncadd [#allocation5], %s19
      %s21 = sshll.u32 %s1, 4
      %s22 = int_to_ptr.vmem [resolvable:$true] %s21
      %27 = dma.vmem_to_smem %s22, 256, [#allocation3], [#allocation5], 128, 128, 8
    $region9: #{tpu_custom_call.1} parent=1 // pred_fallthru
      _
    // Predicated region
    $region10: #{tpu_custom_call.1} parent=1 // pred_check
      _
    $region11: #{tpu_custom_call.1} parent=1 // pred_check_branch
      %29 = sbr.rel (0) target = $region13
    $region12: #{tpu_custom_call.1} parent=1 // pred_region
      %s31 = ssub.s32 16, 16
      %32 = vsyncadd [#allocation7], %s31
      %s34 = sshll.u32 %s2, 4
      %s35 = int_to_ptr.vmem [resolvable:$true] %s34
      %37 = dma.vmem_to_smem %s35, 16, [#allocation6], [#allocation7]
    $region13: #{tpu_custom_call.1} parent=1 // pred_fallthru
      _
    // Predicated region
    $region14: #{tpu_custom_call.1} parent=1 // pred_check
      _
    $region15: #{tpu_custom_call.1} parent=1 // pred_check_branch
      %39 = sbr.rel (0) target = $region17
    $region16: #{tpu_custom_call.1} parent=1 // pred_region
      %s41 = ssub.s32 16, 16
      %42 = vsyncadd [#allocation7], %s41
      %s44 = sshll.u32 %s3, 4
      %s45 = int_to_ptr.vmem [resolvable:$true] %s44
      %47 = dma.vmem_to_smem %s45, 16, [#allocation8], [#allocation7]
    $region17: #{tpu_custom_call.1} parent=1 // pred_fallthru
      _
    // Predicated region
    $region18: #{tpu_custom_call.1} parent=1 // pred_check
      _
    $region19: #{tpu_custom_call.1} parent=1 // pred_check_branch
      %49 = sbr.rel (0) target = $region21
    $region20: #{tpu_custom_call.1} parent=1 // pred_region
      _
    $region21: #{tpu_custom_call.1} parent=1 // pred_fallthru
      _
    // Predicated region
    $region22: #{tpu_custom_call.1} parent=1 // pred_check
      _
    $region23: #{tpu_custom_call.1} parent=1 // pred_check_branch
      %51 = sbr.rel (0) target = $region25
    $region24: #{tpu_custom_call.1} parent=1 // pred_region
      %52 = dma.done [#allocation5], 256
    $region25: #{tpu_custom_call.1} parent=1 // pred_fallthru
      _
    // Predicated region
    $region26: #{tpu_custom_call.1} parent=1 // pred_check
      _
    $region27: #{tpu_custom_call.1} parent=1 // pred_check_branch
      %54 = sbr.rel (0) target = $region29
    $region28: #{tpu_custom_call.1} parent=1 // pred_region
      %55 = dma.done [#allocation7], 16
    $region29: #{tpu_custom_call.1} parent=1 // pred_fallthru
      _
    // Predicated region
    $region30: #{tpu_custom_call.1} parent=1 // pred_check
      _
    $region31: #{tpu_custom_call.1} parent=1 // pred_check_branch
      %57 = sbr.rel (0) target = $region33
    $region32: #{tpu_custom_call.1} parent=1 // pred_region
      %58 = dma.done [#allocation7], 16
    $region33: #{tpu_custom_call.1} parent=1 // pred_fallthru
      _
    %59 = sfence
    %v60 = vld [vmem:[%s0] sm:$0x1]
    %s61 = scalar_lea.vmem %s0, 1
    %v62 = vld [vmem:[%s61] sm:$0x1]
    %s63 = sld [smem:[#allocation3]]
    %v64 = vstv %s63
    %v65 = vmul.f32 %v64, %v60
    %s66 = sld [smem:[#allocation3 + $0x1]]
    %v67 = vstv %s66
    %v68 = vmul.f32 %v67, %v62
    %v69 = vadd.f32 %v65, %v68
    %s70 = sld [smem:[#allocation6]]
    %v71 = vstv %s70
    %v72 = vadd.f32 %v69, %v71
    %s73 = sld [smem:[#allocation8]]
    %v74 = vmax.f32 %v72, 0.0
    %v75 = vstv %s73
    %v76 = vmul.f32 %v75, %v74
    %v77 = vadd.f32 %v76, 0.0
    %s78 = sld [smem:[#allocation3 + $0x80]]
    %v79 = vstv %s78
    %v80 = vmul.f32 %v79, %v60
    %s81 = sld [smem:[#allocation3 + $0x81]]
    %v82 = vstv %s81
    %v83 = vmul.f32 %v82, %v62
    %v84 = vadd.f32 %v80, %v83
    %s85 = sld [smem:[#allocation6 + $0x1]]
    %v86 = vstv %s85
    %v87 = vadd.f32 %v84, %v86
    %s88 = sld [smem:[#allocation8 + $0x1]]
    %v89 = vmax.f32 %v87, 0.0
    %v90 = vstv %s88
    %v91 = vmul.f32 %v90, %v89
    %v92 = vadd.f32 %v77, %v91
    %s93 = sld [smem:[#allocation3 + $0x100]]
    %v94 = vstv %s93
    %v95 = vmul.f32 %v94, %v60
    %s96 = sld [smem:[#allocation3 + $0x101]]
    %v97 = vstv %s96
    %v98 = vmul.f32 %v97, %v62
    %v99 = vadd.f32 %v95, %v98
    %s100 = sld [smem:[#allocation6 + $0x2]]
    %v101 = vstv %s100
    %v102 = vadd.f32 %v99, %v101
    %s103 = sld [smem:[#allocation8 + $0x2]]
    %v104 = vmax.f32 %v102, 0.0
    %v105 = vstv %s103
    %v106 = vmul.f32 %v105, %v104
    %v107 = vadd.f32 %v92, %v106
    %s108 = sld [smem:[#allocation3 + $0x180]]
    %v109 = vstv %s108
    %v110 = vmul.f32 %v109, %v60
    %s111 = sld [smem:[#allocation3 + $0x181]]
    %v112 = vstv %s111
    %v113 = vmul.f32 %v112, %v62
    %v114 = vadd.f32 %v110, %v113
    %s115 = sld [smem:[#allocation6 + $0x3]]
    %v116 = vstv %s115
    %v117 = vadd.f32 %v114, %v116
    %s118 = sld [smem:[#allocation8 + $0x3]]
    %v119 = vmax.f32 %v117, 0.0
    %v120 = vstv %s118
    %v121 = vmul.f32 %v120, %v119
    %v122 = vadd.f32 %v107, %v121
    %s123 = sld [smem:[#allocation3 + $0x200]]
    %v124 = vstv %s123
    %v125 = vmul.f32 %v124, %v60
    %s126 = sld [smem:[#allocation3 + $0x201]]
    %v127 = vstv %s126
    %v128 = vmul.f32 %v127, %v62
    %v129 = vadd.f32 %v125, %v128
    %s130 = sld [smem:[#allocation6 + $0x4]]
    %v131 = vstv %s130
    %v132 = vadd.f32 %v129, %v131
    %s133 = sld [smem:[#allocation8 + $0x4]]
    %v134 = vmax.f32 %v132, 0.0
    %v135 = vstv %s133
    %v136 = vmul.f32 %v135, %v134
    %v137 = vadd.f32 %v122, %v136
    %s138 = sld [smem:[#allocation3 + $0x280]]
    %v139 = vstv %s138
    %v140 = vmul.f32 %v139, %v60
    %s141 = sld [smem:[#allocation3 + $0x281]]
    %v142 = vstv %s141
    %v143 = vmul.f32 %v142, %v62
    %v144 = vadd.f32 %v140, %v143
    %s145 = sld [smem:[#allocation6 + $0x5]]
    %v146 = vstv %s145
    %v147 = vadd.f32 %v144, %v146
    %s148 = sld [smem:[#allocation8 + $0x5]]
    %v149 = vmax.f32 %v147, 0.0
    %v150 = vstv %s148
    %v151 = vmul.f32 %v150, %v149
    %v152 = vadd.f32 %v137, %v151
    %s153 = sld [smem:[#allocation3 + $0x300]]
    %v154 = vstv %s153
    %v155 = vmul.f32 %v154, %v60
    %s156 = sld [smem:[#allocation3 + $0x301]]
    %v157 = vstv %s156
    %v158 = vmul.f32 %v157, %v62
    %v159 = vadd.f32 %v155, %v158
    %s160 = sld [smem:[#allocation6 + $0x6]]
    %v161 = vstv %s160
    %v162 = vadd.f32 %v159, %v161
    %s163 = sld [smem:[#allocation8 + $0x6]]
    %v164 = vmax.f32 %v162, 0.0
    %v165 = vstv %s163
    %v166 = vmul.f32 %v165, %v164
    %v167 = vadd.f32 %v152, %v166
    %s168 = sld [smem:[#allocation3 + $0x380]]
    %v169 = vstv %s168
    %v170 = vmul.f32 %v169, %v60
    %s171 = sld [smem:[#allocation3 + $0x381]]
    %v172 = vstv %s171
    %v173 = vmul.f32 %v172, %v62
    %v174 = vadd.f32 %v170, %v173
    %s175 = sld [smem:[#allocation6 + $0x7]]
    %v176 = vstv %s175
    %v177 = vadd.f32 %v174, %v176
    %s178 = sld [smem:[#allocation8 + $0x7]]
    %v179 = vmax.f32 %v177, 0.0
    %v180 = vstv %s178
    %v181 = vmul.f32 %v180, %v179
    %v182 = vadd.f32 %v167, %v181
    %s183 = sld [smem:[#allocation3 + $0x400]]
    %v184 = vstv %s183
    %v185 = vmul.f32 %v184, %v60
    %s186 = sld [smem:[#allocation3 + $0x401]]
    %v187 = vstv %s186
    %v188 = vmul.f32 %v187, %v62
    %v189 = vadd.f32 %v185, %v188
    %s190 = sld [smem:[#allocation6 + $0x8]]
    %v191 = vstv %s190
    %v192 = vadd.f32 %v189, %v191
    %s193 = sld [smem:[#allocation8 + $0x8]]
    %v194 = vmax.f32 %v192, 0.0
    %v195 = vstv %s193
    %v196 = vmul.f32 %v195, %v194
    %v197 = vadd.f32 %v182, %v196
    %s198 = sld [smem:[#allocation3 + $0x480]]
    %v199 = vstv %s198
    %v200 = vmul.f32 %v199, %v60
    %s201 = sld [smem:[#allocation3 + $0x481]]
    %v202 = vstv %s201
    %v203 = vmul.f32 %v202, %v62
    %v204 = vadd.f32 %v200, %v203
    %s205 = sld [smem:[#allocation6 + $0x9]]
    %v206 = vstv %s205
    %v207 = vadd.f32 %v204, %v206
    %s208 = sld [smem:[#allocation8 + $0x9]]
    %v209 = vmax.f32 %v207, 0.0
    %v210 = vstv %s208
    %v211 = vmul.f32 %v210, %v209
    %v212 = vadd.f32 %v197, %v211
    %s213 = sld [smem:[#allocation2]]
    %v214 = vstv %s213
    %v215 = vadd.f32 %v212, %v214
    %216 = vst [vmem:[#allocation9] sm:$0x1] %v215
    // Predicated region
    $region34: #{tpu_custom_call.1} parent=1 // pred_check
      _
    $region35: #{tpu_custom_call.1} parent=1 // pred_check_branch
      %218 = sbr.rel (0) target = $region37
    $region36: #{tpu_custom_call.1} parent=1 // pred_region
      %s220 = ssub.s32 16, 16
      %221 = vsyncadd [#allocation4], %s220
      %s223 = sshll.u32 [#allocation9], 4
      %s224 = int_to_ptr.vmem [resolvable:$true] %s223
      %226 = dma.vmem_to_hbm [thread:$0]  %s224, 16, %s5, [#allocation4]
    $region37: #{tpu_custom_call.1} parent=1 // pred_fallthru
      _
    // Predicated region
    $region38: #{tpu_custom_call.1} parent=1 // pred_check
      _
    $region39: #{tpu_custom_call.1} parent=1 // pred_check_branch
      %228 = sbr.rel (0) target = $region41
    $region40: #{tpu_custom_call.1} parent=1 // pred_region
      %229 = dma.done [#allocation4], 16
    $region41: #{tpu_custom_call.1} parent=1 // pred_fallthru
      _
    %230 = vsyncpa [#allocation4], 1
    %231 = vsyncpa [#allocation5], 1
    %232 = vsyncpa [#allocation7], 1

</llo_original>
